<compile_context>
chip_gen: v5e
topology: v5e:2x2
jax: 0.10.0
libtpu: 0.0.40
codegen_flags: <defaults>
</compile_context>

<pallas_src>
import jax
import jax.numpy as jnp
from jax.experimental import pallas as pl
from jax.experimental.pallas import tpu as pltpu

# ---- synthetic MixedLoss configuration (would come from __init__) ----------
CE_N = 4        # CrossEntropyLoss consumes 4 output neurons, 1 target column
MSE_N = 8       # MSELoss consumes 8 output neurons, 8 target columns
W_CE = 1.0
W_MSE = 0.5
IN_F = CE_N + MSE_N    # 12 input neurons
TGT_F = 1 + MSE_N      # 9 target columns

NUM_CORES = 2          # leading "parallel" grid axis (v7x megacore); runs
                       # sequentially (and stays correct) on 1-core chips.

# TODO(synk): only the CrossEntropy+MSE instantiation of the generic MixedLoss
# (arbitrary nn.Module list) is implemented here.


def _round_up(a: int, b: int) -> int:
    return (a + b - 1) // b * b


def mixed_loss_kernel(n_ref, x_ref, t_ref, out_ref, acc_ref):
    """One batch-row tile.  x_ref: (bt, IN_F), t_ref: (bt, TGT_F), native layout."""
    c = pl.program_id(0)              # core / partial-sum index ("parallel")
    i = pl.program_id(1)              # tile index within this core ("arbitrary")
    n_steps = pl.num_programs(1)
    bt = x_ref.shape[0]

    @pl.when(i == 0)
    def _init():
        acc_ref[...] = jnp.zeros_like(acc_ref)

    n_valid = n_ref[0]                                    # true batch size (SMEM)
    tile = c * n_steps + i                                # logical tile index
    row0 = tile * bt

    xb = x_ref[...].astype(jnp.float32)                   # (bt, 12)
    tb = t_ref[...].astype(jnp.float32)                   # (bt, 9)

    # row validity mask (handles ragged edge tile and fully-OOB clamped tiles)
    rows = jax.lax.broadcasted_iota(jnp.int32, (bt, 1), 0) + row0
    valid = rows < n_valid                                # (bt, 1) bool

    # ---------------- fragment 0: CrossEntropyLoss (per-row NLL) ------------
    logits = xb[:, 0:CE_N]                                # (bt, 4)
    # NOTE: matches .long() truncation when class labels are exact ints in f32.
    cls = tb[:, 0:1].astype(jnp.int32)                    # (bt, 1)
    m = jnp.max(logits, axis=-1, keepdims=True)           # (bt, 1)
    s = jnp.sum(jnp.exp(logits - m), axis=-1, keepdims=True)
    lse = jnp.log(s) + m                                  # (bt, 1)
    lane = jax.lax.broadcasted_iota(jnp.int32, (bt, CE_N), 1)
    picked = jnp.sum(jnp.where(lane == cls, logits, 0.0),
                     axis=-1, keepdims=True)              # (bt, 1)
    ce = lse - picked                                     # (bt, 1)

    # ---------------- fragment 1: MSELoss (per-row sum of squared errors) ---
    d = xb[:, CE_N:CE_N + MSE_N] - tb[:, 1:1 + MSE_N]     # (bt, 8)
    sse = jnp.sum(d * d, axis=-1, keepdims=True)          # (bt, 1)

    # single weighted per-row contribution; garbage rows selected away lane-wise
    contrib = jnp.where(valid, W_CE * ce + (W_MSE / MSE_N) * sse,
                        jnp.float32(0.0))                 # (bt, 1)
    acc_ref[...] += jnp.sum(contrib, keepdims=True)       # (1, 1) partial

    # ---------------- finalize this core's partial once ---------------------
    @pl.when(i == n_steps - 1)
    def _fin():
        out_ref[0] = acc_ref[...] / n_valid.astype(jnp.float32)


def mixed_loss(x, target, *, block_b: int = 4096):
    """x: (B, IN_F), target: (B, TGT_F). Returns shape (1,) float32."""
    B = x.shape[0]
    assert x.shape[1] == IN_F and target.shape[1] == TGT_F

    # row tile: multiple of 8 (sublane tile), or the full batch if it fits
    block_b = max(8, _round_up(block_b, 8))
    bt = B if B <= block_b else block_b
    n_tiles = pl.cdiv(B, bt)                      # ragged edge handled in-kernel
    tiles_per_core = pl.cdiv(n_tiles, NUM_CORES)
    grid = (NUM_CORES, tiles_per_core)

    def in_map(c, i, n_ref):                      # n_ref = scalar-prefetch (unused)
        t = c * tiles_per_core + i
        # clamp fully-out-of-range tiles back onto the last real tile; their
        # rows are >= B so the in-kernel validity mask zeroes their contribution
        return (jnp.minimum(t, n_tiles - 1), 0)

    n_arr = jnp.asarray([B], dtype=jnp.int32)     # scalar-prefetch: true batch size

    partials = pl.pallas_call(
        mixed_loss_kernel,
        out_shape=jax.ShapeDtypeStruct((NUM_CORES, 1, 1), jnp.float32),
        grid_spec=pltpu.PrefetchScalarGridSpec(
            num_scalar_prefetch=1,
            grid=grid,
            in_specs=[
                pl.BlockSpec((bt, IN_F), in_map),     # x block  (native layout)
                pl.BlockSpec((bt, TGT_F), in_map),    # target block
            ],
            out_specs=pl.BlockSpec((1, 1, 1), lambda c, i, n_ref: (c, 0, 0)),
            scratch_shapes=[
                pltpu.VMEM((1, 1), jnp.float32),      # per-core running sum
            ],
        ),
        compiler_params=pltpu.CompilerParams(
            # outer axis: independent per-core partials -> safe to parallelize;
            # inner axis: sequential reduction (accumulator + last-step write).
            dimension_semantics=("parallel", "arbitrary"),
            vmem_limit_bytes=32 * 1024 * 1024,        # portable to v7x (64 MiB)
        ),
    )(n_arr, x, target)

    # add the per-core partials (each already divided by the true batch size)
    return jnp.sum(partials).reshape(1)


def mixed_loss_ref(x, target):
    """Pure-JAX reference mirroring the PyTorch forward."""
    logits = x[:, 0:CE_N].astype(jnp.float32)
    cls = target[:, 0].astype(jnp.int32)
    logp = jax.nn.log_softmax(logits, axis=-1)
    ce = -jnp.mean(jnp.take_along_axis(logp, cls[:, None], axis=-1))
    pred = x[:, CE_N:CE_N + MSE_N].astype(jnp.float32)
    tgt = target[:, 1:1 + MSE_N].astype(jnp.float32)
    mse = jnp.mean((pred - tgt) ** 2)
    return jnp.reshape(W_CE * ce + W_MSE * mse, (1,))


def _make_inputs(key, B):
    kx, kc, kr = jax.random.split(key, 3)
    x = jax.random.normal(kx, (B, IN_F), dtype=jnp.float32)
    cls_idx = jax.random.randint(kc, (B, 1), 0, CE_N).astype(jnp.float32)
    reg_tgt = jax.random.normal(kr, (B, MSE_N), dtype=jnp.float32)
    target = jnp.concatenate([cls_idx, reg_tgt], axis=1)       # (B, TGT_F)
    return x, target


if __name__ == "__main__":
    # small primary test (single tile, core 1 fully masked)
    x, target = _make_inputs(jax.random.PRNGKey(0), B=8)
    out = mixed_loss(x, target)
    jax.block_until_ready(out)
    ref = mixed_loss_ref(x, target)
    assert out.shape == (1,)
    assert jnp.allclose(out, ref, rtol=1e-5, atol=1e-5), (out, ref)

    # ragged edge tile split across the two core-partials (no padding anywhere)
    x2, target2 = _make_inputs(jax.random.PRNGKey(1), B=200)
    out2 = mixed_loss(x2, target2, block_b=128)
    jax.block_until_ready(out2)
    ref2 = mixed_loss_ref(x2, target2)
    assert jnp.allclose(out2, ref2, rtol=1e-5, atol=1e-5), (out2, ref2)

    # multi-step accumulation per core + ragged edge + clamped OOB tile
    x3, target3 = _make_inputs(jax.random.PRNGKey(2), B=100)
    out3 = mixed_loss(x3, target3, block_b=32)
    jax.block_until_ready(out3)
    ref3 = mixed_loss_ref(x3, target3)
    assert jnp.allclose(out3, ref3, rtol=1e-5, atol=1e-5), (out3, ref3)

    print("KERNEL_OK")
</pallas_src>

<mosaic_0001>
module attributes {stable_mosaic.version = 11 : i64} {
  func.func @mixed_loss_kernel(%arg0: i32, %arg1: i32, %arg2: memref<1xi32, #tpu.memory_space<smem>>, %arg3: memref<8x12xf32, #tpu.memory_space<vmem>>, %arg4: memref<8x9xf32, #tpu.memory_space<vmem>>, %arg5: memref<1x1x1xf32, #tpu.memory_space<vmem>>, %arg6: memref<1x1xf32, #tpu.memory_space<vmem>>) attributes {dimension_semantics = [#tpu.dimension_semantics<parallel>, #tpu.dimension_semantics<arbitrary>], iteration_bounds = array<i64: 2, 1>, scalar_prefetch = 1 : i64, scratch_operands = 1 : i64, tpu.core_type = #tpu.core_type<tc>, window_params = [{transform_indices = @transform_0, window_bounds = array<i64: 8, 12>}, {transform_indices = @transform_1, window_bounds = array<i64: 8, 9>}, {transform_indices = @transform_2, window_bounds = array<i64: 1, 1, 1>}]} {
    %c0_i32 = arith.constant 0 : i32
    %0 = arith.cmpi eq, %arg1, %c0_i32 : i32
    %1 = arith.extui %0 : i1 to i32
    %c0_i32_0 = arith.constant 0 : i32
    %2 = arith.cmpi ne, %1, %c0_i32_0 : i32
    scf.if %2 {
      %cst_19 = arith.constant 0.000000e+00 : f32
      %58 = vector.broadcast %cst_19 : f32 to vector<1x1xf32>
      %c0_20 = arith.constant 0 : index
      %c0_21 = arith.constant 0 : index
      %59 = vector.load %arg6[%c0_20, %c0_21] : memref<1x1xf32, #tpu.memory_space<vmem>>, vector<1x1xf32>
      tpu.vector_store %arg6[%c0_20, %c0_21], %58 {strides = array<i32>} : memref<1x1xf32, #tpu.memory_space<vmem>>, vector<1x1xf32>,
    } else {
    }
    %c0 = arith.constant 0 : index
    %3 = memref.load %arg2[%c0] : memref<1xi32, #tpu.memory_space<smem>>
    %c1_i32 = arith.constant 1 : i32
    %4 = arith.muli %arg0, %c1_i32 : i32
    %5 = arith.addi %4, %arg1 : i32
    %c8_i32 = arith.constant 8 : i32
    %6 = arith.muli %5, %c8_i32 : i32
    %c0_1 = arith.constant 0 : index
    %c0_2 = arith.constant 0 : index
    %7 = vector.load %arg3[%c0_1, %c0_2] : memref<8x12xf32, #tpu.memory_space<vmem>>, vector<8x12xf32>
    %c0_3 = arith.constant 0 : index
    %c0_4 = arith.constant 0 : index
    %8 = vector.load %arg4[%c0_3, %c0_4] : memref<8x9xf32, #tpu.memory_space<vmem>>, vector<8x9xf32>
    %9 = tpu.iota {dimensions = array<i32: 0>} : vector<8x1xi32>
    %10 = vector.broadcast %6 : i32 to vector<8x1xi32>
    %11 = arith.addi %9, %10 : vector<8x1xi32>
    %12 = vector.broadcast %3 : i32 to vector<8x1xi32>
    %13 = arith.cmpi slt, %11, %12 : vector<8x1xi32>
    %14 = vector.extract_strided_slice %7 {offsets = [0, 0], sizes = [8, 4], strides = [1, 1]} : vector<8x12xf32> to vector<8x4xf32>
    %15 = vector.extract_strided_slice %8 {offsets = [0, 0], sizes = [8, 1], strides = [1, 1]} : vector<8x9xf32> to vector<8x1xf32>
    %16 = arith.fptosi %15 : vector<8x1xf32> to vector<8x1xi32>
    %cst = arith.constant dense<0xFF800000> : vector<8xf32>
    %17 = vector.multi_reduction <maximumf>, %14, %cst [1] : vector<8x4xf32> to vector<8xf32>
    %18 = vector.shape_cast %17 : vector<8xf32> to vector<8x1xf32>
    %19 = vector.broadcast %18 : vector<8x1xf32> to vector<8x4xf32>
    %20 = arith.subf %14, %19 : vector<8x4xf32>
    %21 = math.exp %20 : vector<8x4xf32>
    %cst_5 = arith.constant dense<0.000000e+00> : vector<8xf32>
    %22 = vector.multi_reduction <add>, %21, %cst_5 [1] : vector<8x4xf32> to vector<8xf32>
    %23 = vector.shape_cast %22 : vector<8xf32> to vector<8x1xf32>
    %24 = math.log %23 : vector<8x1xf32>
    %25 = arith.addf %24, %18 : vector<8x1xf32>
    %26 = tpu.iota {dimensions = array<i32: 1>} : vector<8x4xi32>
    %27 = vector.broadcast %16 : vector<8x1xi32> to vector<8x4xi32>
    %28 = arith.cmpi eq, %26, %27 : vector<8x4xi32>
    %cst_6 = arith.constant 0.000000e+00 : f32
    %29 = vector.broadcast %cst_6 : f32 to vector<8x4xf32>
    %30 = arith.select %28, %14, %29 : vector<8x4xi1>, vector<8x4xf32>
    %cst_7 = arith.constant dense<0.000000e+00> : vector<8xf32>
    %31 = vector.multi_reduction <add>, %30, %cst_7 [1] : vector<8x4xf32> to vector<8xf32>
    %32 = vector.shape_cast %31 : vector<8xf32> to vector<8x1xf32>
    %33 = arith.subf %25, %32 : vector<8x1xf32>
    %34 = vector.extract_strided_slice %7 {offsets = [0, 4], sizes = [8, 8], strides = [1, 1]} : vector<8x12xf32> to vector<8x8xf32>
    %35 = vector.extract_strided_slice %8 {offsets = [0, 1], sizes = [8, 8], strides = [1, 1]} : vector<8x9xf32> to vector<8x8xf32>
    %36 = arith.subf %34, %35 : vector<8x8xf32>
    %37 = arith.mulf %36, %36 : vector<8x8xf32>
    %cst_8 = arith.constant dense<0.000000e+00> : vector<8xf32>
    %38 = vector.multi_reduction <add>, %37, %cst_8 [1] : vector<8x8xf32> to vector<8xf32>
    %39 = vector.shape_cast %38 : vector<8xf32> to vector<8x1xf32>
    %cst_9 = arith.constant 1.000000e+00 : f32
    %40 = vector.broadcast %cst_9 : f32 to vector<8x1xf32>
    %41 = arith.mulf %40, %33 : vector<8x1xf32>
    %cst_10 = arith.constant 6.250000e-02 : f32
    %42 = vector.broadcast %cst_10 : f32 to vector<8x1xf32>
    %43 = arith.mulf %42, %39 : vector<8x1xf32>
    %44 = arith.addf %41, %43 : vector<8x1xf32>
    %cst_11 = arith.constant 0.000000e+00 : f32
    %45 = vector.broadcast %cst_11 : f32 to vector<8x1xf32>
    %46 = arith.select %13, %44, %45 : vector<8x1xi1>, vector<8x1xf32>
    %c0_12 = arith.constant 0 : index
    %c0_13 = arith.constant 0 : index
    %47 = vector.load %arg6[%c0_12, %c0_13] : memref<1x1xf32, #tpu.memory_space<vmem>>, vector<1x1xf32>
    %48 = vector.shape_cast %46 : vector<8x1xf32> to vector<1x8x1xf32>
    %cst_14 = arith.constant dense<0.000000e+00> : vector<1xf32>
    %49 = vector.multi_reduction <add>, %48, %cst_14 [1, 2] : vector<1x8x1xf32> to vector<1xf32>
    %50 = vector.shape_cast %49 : vector<1xf32> to vector<1x1x1xf32>
    %51 = vector.extract %50[0, 0, 0] : f32 from vector<1x1x1xf32>
    %52 = vector.broadcast %51 : f32 to vector<1x1xf32>
    %53 = arith.addf %47, %52 : vector<1x1xf32>
    %c0_15 = arith.constant 0 : index
    %c0_16 = arith.constant 0 : index
    %54 = vector.load %arg6[%c0_15, %c0_16] : memref<1x1xf32, #tpu.memory_space<vmem>>, vector<1x1xf32>
    tpu.vector_store %arg6[%c0_15, %c0_16], %53 {strides = array<i32>} : memref<1x1xf32, #tpu.memory_space<vmem>>, vector<1x1xf32>,
    %c0_i32_17 = arith.constant 0 : i32
    %55 = arith.cmpi eq, %arg1, %c0_i32_17 : i32
    %56 = arith.extui %55 : i1 to i32
    %c0_i32_18 = arith.constant 0 : i32
    %57 = arith.cmpi ne, %56, %c0_i32_18 : i32
    scf.if %57 {
      %c0_19 = arith.constant 0 : index
      %c0_20 = arith.constant 0 : index
      %58 = vector.load %arg6[%c0_19, %c0_20] : memref<1x1xf32, #tpu.memory_space<vmem>>, vector<1x1xf32>
      %59 = arith.sitofp %3 : i32 to f32
      %60 = vector.broadcast %59 : f32 to vector<1x1xf32>
      %61 = arith.divf %58, %60 : vector<1x1xf32>
      %c0_21 = arith.constant 0 : index
      %c0_22 = arith.constant 0 : index
      %c0_23 = arith.constant 0 : index
      %62 = vector.load %arg5[%c0_21, %c0_22, %c0_23] : memref<1x1x1xf32, #tpu.memory_space<vmem>>, vector<1x1x1xf32>
      %63 = vector.shape_cast %62 : vector<1x1x1xf32> to vector<1x1xf32>
      %64 = vector.shape_cast %61 : vector<1x1xf32> to vector<1x1x1xf32>
      tpu.vector_store %arg5[%c0_21, %c0_22, %c0_23], %64 {strides = array<i32>} : memref<1x1x1xf32, #tpu.memory_space<vmem>>, vector<1x1x1xf32>,
    } else {
    }
    return
  }
  func.func @transform_0(%arg0: i32, %arg1: i32, %arg2: memref<1xi32, #tpu.memory_space<smem>>) -> (i32, i32) {
    %c1_i32 = arith.constant 1 : i32
    %0 = arith.muli %arg0, %c1_i32 : i32
    %1 = arith.addi %0, %arg1 : i32
    %c0_i32 = arith.constant 0 : i32
    %2 = arith.minsi %1, %c0_i32 : i32
    %c0_i32_0 = arith.constant 0 : i32
    %c0_i32_1 = arith.constant 0 : i32
    return %2, %c0_i32_0 : i32, i32
  }
  func.func @transform_1(%arg0: i32, %arg1: i32, %arg2: memref<1xi32, #tpu.memory_space<smem>>) -> (i32, i32) {
    %c1_i32 = arith.constant 1 : i32
    %0 = arith.muli %arg0, %c1_i32 : i32
    %1 = arith.addi %0, %arg1 : i32
    %c0_i32 = arith.constant 0 : i32
    %2 = arith.minsi %1, %c0_i32 : i32
    %c0_i32_0 = arith.constant 0 : i32
    %c0_i32_1 = arith.constant 0 : i32
    return %2, %c0_i32_0 : i32, i32
  }
  func.func @transform_2(%arg0: i32, %arg1: i32, %arg2: memref<1xi32, #tpu.memory_space<smem>>) -> (i32, i32, i32) {
    %c0_i32 = arith.constant 0 : i32
    %c0_i32_0 = arith.constant 0 : i32
    %c0_i32_1 = arith.constant 0 : i32
    return %arg0, %c0_i32, %c0_i32_0 : i32, i32, i32
  }
}

</mosaic_0001>

<llo_original>
// kernel: tpu_custom_call.1
$region0: #{tpu_custom_call.1}
  #allocation0 [shape = 'u32[]', space=smem, size = 0x4, offset = 0x4, fixed_abs, tag = 'smem constant byte address 0x4 - core index']
  #allocation1 [shape = 'u32[72,128]{1,0:T(1,128)}', space=vmem, size = 0x9000, scoped, tag = 'internal scratch']
  #allocation2 [shape = 'f32[1,1]{1,0:T(1,128)}', space=vmem, size = 0x200, scoped, tag = 'scratch operand']
  #allocation3 [shape = 's32[1]{0}', space=sflag, size = 0x4, scoped, tag = 'scoped memory for tpu_custom_call.1']
  #allocation4 [shape = 's32[1]{0:T(128)S(6)}', space=smem, size = 0x200, scoped, tag = 'prefetched SMEM operand 0']
  %s0 = inlined_call_operand.<no memory space> [shape: s32[1], index: 0, kind: input, shape index: {}]
  %s1 = inlined_call_operand.hbm [shape: f32[8,12], index: 1, kind: input, shape index: {}]
  %s2 = inlined_call_operand.hbm [shape: f32[8,9], index: 2, kind: input, shape index: {}]
  %s3 = inlined_call_operand.vmem [shape: f32[2,1,1], index: 3, kind: output, shape index: {}]
  %s4 = sld [smem:[#allocation0]]
  $region57: #{tpu_custom_call.1} parent=0
    _
  %s6 = ssub.s32 1, %s4
  %s7 = scalar_select 0, %s6, %s4
  %8 = sst [smem:[#allocation4]] %s0
  $region1: #{tpu_custom_call.1} parent=0
    #allocation5 [shape = 'u8[8192]{0}', space=vmem, size = 0x2000, scoped, tag = 'input window, operand 1']
    #allocation6 [shape = 's32[2]{0}', space=sflag, size = 0x8, scoped, tag = 'scoped memory for tpu_custom_call.1']
    #allocation7 [shape = 'u8[8192]{0}', space=vmem, size = 0x2000, scoped, tag = 'input window, operand 2']
    #allocation8 [shape = 's32[2]{0}', space=sflag, size = 0x8, scoped, tag = 'scoped memory for tpu_custom_call.1']
    %9 = vsyncpa [#allocation6], 0
    %s10 = scalar_lea.sflag [#allocation6], 1
    %11 = vsyncpa %s10, 0
    %12 = vsyncpa [#allocation8], 0
    %s13 = scalar_lea.sflag [#allocation8], 1
    %14 = vsyncpa %s13, 0
    loop: start=0, step=1, limit=4
    $region2: #{tpu_custom_call.1} parent=1 // loop_pre_header
      _
    $region3: #{tpu_custom_call.1} parent=1 // loop_header
      %s16 = sphi 0, %s20
      %p17 = scmp.ge.s32.totalorder %s16, 4
      %s23 = sphi 0, %s35
      %s24 = sphi 0, %s31
      %s25 = sphi 0, %s23
      %s26 = sphi 0, %s24
      %s27 = sphi 0, %s25
      %s28 = sphi 0, %s26
      %s44 = sphi 0, %s46
      %s47 = sphi 0, %s44
      %s48 = sphi 0, %s47
      %s64 = sphi 0, %s48
      %s76 = sphi 0, %s78
      %s79 = sphi 0, %s76
      %s80 = sphi 0, %s79
      %s96 = sphi 0, %s80
      %s102 = sphi 0, %s104
      %s105 = sphi 0, %s102
      %s106 = sphi 0, %s105
      %s122 = sphi 0, %s106
    $region4: #{tpu_custom_call.1} parent=1 // loop_header_branch
      %19 = sbr.rel (%p17) target = $region8
    $region5: #{tpu_custom_call.1} parent=1 // loop_body
      %s21 = ssub.s32 %s16, 1
      %s22 = ssub.s32 %s16, 2
      %s29 = sadd.s32 1, %s24
      %p30 = scmp.ge.s32.totalorder %s29, 1
      %s31 = scalar_select %p30, 0, %s29
      %s32 = sadd.s32 1, %s23
      %s33 = scalar_select %p30, %s32, %s23
      %p34 = scmp.ge.s32.totalorder %s33, 2
      %s35 = scalar_select %p34, 0, %s33
      %s36 = sadd.s32 %s23, %s24
      %p37 = scmp.lt.s32.totalorder %s36, 0
      %s38 = scalar_select %p37, %s36, 0
      %s39 = sadd.s32 %s35, %s31
      %p40 = scmp.lt.s32.totalorder %s39, 0
      %s41 = scalar_select %p40, %s39, 0
      %s42 = ssub.s32 %s38, %s41
      %p43 = scmp.eq.s32.totalorder %s42, 0
      %s45 = sadd.s32 %s44, 1
      %s46 = scalar_select %p43, %s44, %s45
      %p49 = pneg %p43
      %p50 = scmp.eq.s32.totalorder %s16, 1
      %p51 = por %p49, %p50
      %p52 = scmp.ne.s32.totalorder %s44, %s47
      %p53 = scmp.eq.s32.totalorder %s16, 0
      %p54 = por %p52, %p53
      %p55 = scmp.ne.s32.totalorder %s44, %s47
      %p56 = scmp.eq.s32.totalorder %s21, 1
      %p57 = por %p55, %p56
      %p58 = scmp.ne.s32.totalorder %s47, %s48
      %p59 = scmp.eq.s32.totalorder %s21, 0
      %p60 = por %p58, %p59
      %p61 = scmp.ne.s32.totalorder %s47, %s48
      %p62 = scmp.eq.s32.totalorder %s22, 1
      %p63 = por %p61, %p62
      %p65 = scmp.ne.s32.totalorder %s48, %s64
      %p66 = scmp.eq.s32.totalorder %s22, 0
      %p67 = por %p65, %p66
      %s68 = sadd.s32 %s23, %s24
      %p69 = scmp.lt.s32.totalorder %s68, 0
      %s70 = scalar_select %p69, %s68, 0
      %s71 = sadd.s32 %s35, %s31
      %p72 = scmp.lt.s32.totalorder %s71, 0
      %s73 = scalar_select %p72, %s71, 0
      %s74 = ssub.s32 %s70, %s73
      %p75 = scmp.eq.s32.totalorder %s74, 0
      %s77 = sadd.s32 %s76, 1
      %s78 = scalar_select %p75, %s76, %s77
      %p81 = pneg %p75
      %p82 = scmp.eq.s32.totalorder %s16, 1
      %p83 = por %p81, %p82
      %p84 = scmp.ne.s32.totalorder %s76, %s79
      %p85 = scmp.eq.s32.totalorder %s16, 0
      %p86 = por %p84, %p85
      %p87 = scmp.ne.s32.totalorder %s76, %s79
      %p88 = scmp.eq.s32.totalorder %s21, 1
      %p89 = por %p87, %p88
      %p90 = scmp.ne.s32.totalorder %s79, %s80
      %p91 = scmp.eq.s32.totalorder %s21, 0
      %p92 = por %p90, %p91
      %p93 = scmp.ne.s32.totalorder %s79, %s80
      %p94 = scmp.eq.s32.totalorder %s22, 1
      %p95 = por %p93, %p94
      %p97 = scmp.ne.s32.totalorder %s80, %s96
      %p98 = scmp.eq.s32.totalorder %s22, 0
      %p99 = por %p97, %p98
      %s100 = ssub.s32 %s23, %s35
      %p101 = scmp.eq.s32.totalorder %s100, 0
      %s103 = sadd.s32 %s102, 1
      %s104 = scalar_select %p101, %s102, %s103
      %p107 = pneg %p101
      %p108 = scmp.eq.s32.totalorder %s16, 1
      %p109 = por %p107, %p108
      %p110 = scmp.ne.s32.totalorder %s102, %s105
      %p111 = scmp.eq.s32.totalorder %s16, 0
      %p112 = por %p110, %p111
      %p113 = scmp.ne.s32.totalorder %s102, %s105
      %p114 = scmp.eq.s32.totalorder %s21, 1
      %p115 = por %p113, %p114
      %p116 = scmp.ne.s32.totalorder %s105, %s106
      %p117 = scmp.eq.s32.totalorder %s21, 0
      %p118 = por %p116, %p117
      %p119 = scmp.ne.s32.totalorder %s105, %s106
      %p120 = scmp.eq.s32.totalorder %s22, 1
      %p121 = por %p119, %p120
      %p123 = scmp.ne.s32.totalorder %s106, %s122
      %p124 = scmp.eq.s32.totalorder %s22, 0
      %p125 = por %p123, %p124
      %p126 = scmp.le.s32.totalorder 1, %s16
      %p127 = scmp.lt.s32.totalorder %s16, 3
      %p128 = pnand %p126, %p127
      %p129 = pneg %p128
      // Predicated region
      $region9: #{tpu_custom_call.1} parent=5 // pred_check
        _
      $region10: #{tpu_custom_call.1} parent=5 // pred_check_branch
        %131 = sbr.rel (%p128) target = $region12
      $region11: #{tpu_custom_call.1} parent=5 // pred_region
        %s132 = ssub.s32 %s16, 1
      $region12: #{tpu_custom_call.1} parent=5 // pred_fallthru
        _
      %p133 = scmp.lt.s32.totalorder %s16, 2
      // Predicated region
      $region13: #{tpu_custom_call.1} parent=5 // pred_check
        %p134 = pneg %p133
      $region14: #{tpu_custom_call.1} parent=5 // pred_check_branch
        %136 = sbr.rel (%p134) target = $region16
      $region15: #{tpu_custom_call.1} parent=5 // pred_region
        // Predicated region
        $region17: #{tpu_custom_call.1} parent=15 // pred_check
          %p137 = pneg %p54
        $region18: #{tpu_custom_call.1} parent=15 // pred_check_branch
          %139 = sbr.rel (%p137) target = $region20
        $region19: #{tpu_custom_call.1} parent=15 // pred_region
          %s140 = sand.u32 %s44, 1
          %s141 = scalar_lea.sflag [#allocation6], %s140
          %s142 = sand.u32 %s44, 1
          %s143 = smul.addr %s142, 8
          %s144 = scalar_lea.vmem [#allocation5], %s143
          %s145 = sadd.s32 %s23, %s24
          %p146 = scmp.lt.s32.totalorder %s145, 0
          %s147 = scalar_select %p146, %s145, 0
          %149 = vsyncadd %s141, 0
          %s150 = smul.addr %s147, 8
          %s151 = scalar_lea.hbm %s1, %s150
          %s153 = sshll.u32 %s151, 4
          %s154 = int_to_ptr.hbm [resolvable:$true] %s153
          %s155 = sshll.u32 %s144, 4
          %s156 = int_to_ptr.vmem [resolvable:$true] %s155
          %158 = dma.hbm_to_vmem [thread:$0]  %s154, 128, %s156, %s141
        $region20: #{tpu_custom_call.1} parent=15 // pred_fallthru
          _
        // Predicated region
        $region21: #{tpu_custom_call.1} parent=15 // pred_check
          %p159 = pneg %p86
        $region22: #{tpu_custom_call.1} parent=15 // pred_check_branch
          %161 = sbr.rel (%p159) target = $region24
        $region23: #{tpu_custom_call.1} parent=15 // pred_region
          %s162 = sand.u32 %s76, 1
          %s163 = scalar_lea.sflag [#allocation8], %s162
          %s164 = sand.u32 %s76, 1
          %s165 = smul.addr %s164, 8
          %s166 = scalar_lea.vmem [#allocation7], %s165
          %s167 = sadd.s32 %s23, %s24
          %p168 = scmp.lt.s32.totalorder %s167, 0
          %s169 = scalar_select %p168, %s167, 0
          %171 = vsyncadd %s163, 0
          %s172 = smul.addr %s169, 8
          %s173 = scalar_lea.hbm %s2, %s172
          %s175 = sshll.u32 %s173, 4
          %s176 = int_to_ptr.hbm [resolvable:$true] %s175
          %s177 = sshll.u32 %s166, 4
          %s178 = int_to_ptr.vmem [resolvable:$true] %s177
          %180 = dma.hbm_to_vmem [thread:$0]  %s176, 128, %s178, %s163
        $region24: #{tpu_custom_call.1} parent=15 // pred_fallthru
          _
      $region16: #{tpu_custom_call.1} parent=5 // pred_fallthru
        _
      %p181 = scmp.le.s32.totalorder 1, %s16
      %p182 = scmp.lt.s32.totalorder %s16, 3
      %p183 = pnand %p181, %p182
      %p184 = pneg %p183
      // Predicated region
      $region25: #{tpu_custom_call.1} parent=5 // pred_check
        _
      $region26: #{tpu_custom_call.1} parent=5 // pred_check_branch
        %186 = sbr.rel (%p183) target = $region28
      $region27: #{tpu_custom_call.1} parent=5 // pred_region
        %s187 = ssub.s32 %s16, 1
        %s188 = sand.u32 %s47, 1
        %s189 = scalar_lea.sflag [#allocation6], %s188
        %s190 = sand.u32 %s47, 1
        %s191 = smul.addr %s190, 8
        %s192 = scalar_lea.vmem [#allocation5], %s191
        // Predicated region
        $region29: #{tpu_custom_call.1} parent=27 // pred_check
          %p193 = pneg %p60
        $region30: #{tpu_custom_call.1} parent=27 // pred_check_branch
          %195 = sbr.rel (%p193) target = $region32
        $region31: #{tpu_custom_call.1} parent=27 // pred_region
          %197 = dma.done %s189, 128
        $region32: #{tpu_custom_call.1} parent=27 // pred_fallthru
          _
        %s198 = sand.u32 %s79, 1
        %s199 = scalar_lea.sflag [#allocation8], %s198
        %s200 = sand.u32 %s79, 1
        %s201 = smul.addr %s200, 8
        %s202 = scalar_lea.vmem [#allocation7], %s201
        // Predicated region
        $region33: #{tpu_custom_call.1} parent=27 // pred_check
          %p203 = pneg %p92
        $region34: #{tpu_custom_call.1} parent=27 // pred_check_branch
          %205 = sbr.rel (%p203) target = $region36
        $region35: #{tpu_custom_call.1} parent=27 // pred_region
          %207 = dma.done %s199, 128
        $region36: #{tpu_custom_call.1} parent=27 // pred_fallthru
          _
        %s208 = sand.u32 %s47, 1
        %s209 = scalar_lea.sflag [#allocation6], %s208
        %s210 = sand.u32 %s47, 1
        %s211 = smul.addr %s210, 8
        %s212 = scalar_lea.vmem [#allocation5], %s211
        %p213 = pneg %p60
        %p214 = pneg %p57
        %s215 = sand.u32 %s79, 1
        %s216 = scalar_lea.sflag [#allocation8], %s215
        %s217 = sand.u32 %s79, 1
        %s218 = smul.addr %s217, 8
        %s219 = scalar_lea.vmem [#allocation7], %s218
        %p220 = pneg %p92
        %p221 = pneg %p89
        %p222 = pneg %p118
        %p223 = pneg %p115
        %p224 = scmp.lt.s32.totalorder %s25, 1
        %s225 = scalar_select %p224, %s25, 1
        %s226 = scalar_lea.vmem %s3, %s225
        %s227 = sadd.s32 %s25, %s26
        %p228 = scmp.lt.s32.totalorder %s227, 0
        %s229 = scalar_select %p228, %s227, 0
        %s230 = sadd.s32 %s25, %s26
        %p231 = scmp.lt.s32.totalorder %s230, 0
        %s232 = scalar_select %p231, %s230, 0
        %p233 = scmp.lt.s32.totalorder %s25, 1
        %s234 = scalar_select %p233, %s25, 1
        %s235 = scalar_lea.vmem %s3, %s234
        %p236 = scmp.eq.s32.totalorder %s26, 0
        // Predicated region
        $region37: #{tpu_custom_call.1} parent=27 // pred_check
          %p237 = pneg %p236
        $region38: #{tpu_custom_call.1} parent=27 // pred_check_branch
          %239 = sbr.rel (%p237) target = $region40
        $region39: #{tpu_custom_call.1} parent=27 // pred_region
          %vm240 = vcmask 0
          %241 = vst.msk [vmem:[#allocation2] sm:$0x1] %vm240, 0.0
        $region40: #{tpu_custom_call.1} parent=27 // pred_fallthru
          _
        %s242 = sld [smem:[#allocation4]]
        %s243 = sadd.s32 %s25, %s26
        %s244 = smul.u32 %s243, 8
        %v245 = vld [vmem:[%s192] sm:$0xff]
        %v246 = vld [vmem:[%s202] sm:$0xff]
        %v247 = vlaneseq
        %v248 = vshrl.u32 %v247, 7
        %v249 = vstv %s244
        %v250 = vadd.s32 %v248, %v249
        %v251 = vstv %s242
        %vm252 = vcmp.lt.s32.totalorder %v250, %v251
        %v253 = vcvt.f32.s32.to.zero.pseudo %v246
        %vm254 = vcmask 31744
        %v255 = vsel %vm254, %v245, -inf
        %256 = vmax.xlane.f32.xlu0 %v255
        %v257 = vpop.xlane.xlu0 %256
        %v258 = vsub.f32 %v245, %v257
        %v259 = vmul.f32 %v258, 1.442695
        %v260 = vpow.pop %v259
        %v261 = vsel %vm254, %v260, 0.0
        %262 = vadd.xlane.f32.xlu0 %v261
        %v263 = vpop.xlane.xlu0 %262
        %v264 = vlog2.pop %v263
        %v265 = vmul.f32 %v264, 0.6931472
        %v266 = vadd.f32 %v265, %v257
        %v267 = vlaneseq
        %v268 = vand.u32 %v267, 127
        %269 = vset.pattern.permute.xlu0 0
        %270 = vperm.xlu0 %269, %v253
        %v271 = vpop.permute.xlu0 %270
        %vm272 = vcmp.eq.s32.totalorder %v268, %v271
        %v273 = vsel %vm272, %v245, 0.0
        %v274 = vsel %vm254, %v273, 0.0
        %275 = vadd.xlane.f32.xlu0 %v274
        %v276 = vpop.xlane.xlu0 %275
        %v277 = vsub.f32 %v266, %v276
        %279 = vrot.lane.b32.xlu0 %v246, 3
        %v280 = vpop.permute.xlu0 %279
        %v282 = vsub.f32 %v245, %v280
        %v283 = vmul.f32 %v282, %v282
        %285 = vrot.lane.b32.xlu0 %v283, 124
        %v286 = vpop.permute.xlu0 %285
        %vm288 = vcmask 64512
        %v289 = vsel %vm288, %v286, 0.0
        %290 = vadd.xlane.f32.xlu0 %v289
        %v291 = vpop.xlane.xlu0 %290
        %v292 = vmul.f32 %v291, 0.0625
        %v293 = vadd.f32 %v277, %v292
        %v294 = vsel %vm252, %v293, 0.0
        %v295 = vld [vmem:[#allocation2] sm:$0x1]
        %vm296 = vcmask 7168
        %v297 = vsel %vm296, %v294, 0.0
        %298 = vadd.xlane.f32.xlu0 %v297
        %v299 = vpop.xlane.xlu0 %298
        %v300 = vrot.slane %v299, 4
        %v301 = vadd.f32 %v299, %v300
        %v302 = vrot.slane %v301, 2
        %v303 = vadd.f32 %v301, %v302
        %v304 = vrot.slane %v303, 1
        %v305 = vadd.f32 %v303, %v304
        %s306 = vtos %v305
        %v307 = vstv %s306
        %v308 = vadd.f32 %v295, %v307
        %vm309 = vcmask 0
        %310 = vst.msk [vmem:[#allocation2] sm:$0x1] %vm309, %v308
        // Predicated region
        $region41: #{tpu_custom_call.1} parent=27 // pred_check
          %p311 = pneg %p236
        $region42: #{tpu_custom_call.1} parent=27 // pred_check_branch
          %313 = sbr.rel (%p311) target = $region44
        $region43: #{tpu_custom_call.1} parent=27 // pred_region
          %v314 = vld [vmem:[#allocation2] sm:$0x1]
          %s315 = scvt.s32.f32 %s242
          %v316 = vstv %s315
          %v317 = vrcp.pop %v316
          %v318 = vmul.f32 %v316, %v317
          %v319 = vsub.f32 1.0, %v318
          %v320 = vmul.f32 %v317, %v319
          %v321 = vadd.f32 %v317, %v320
          %vm322 = vweird.f32 %v316
          %vm323 = vweird.f32 %v317
          %vm324 = vmor %vm322, %vm323
          %v325 = vsel %vm324, %v317, %v321
          %v326 = vand.u32 2147483647, %v316
          %vm327 = vcmp.eq.f32.partialorder %v326, 8.507059e+37
          %v328 = vand.u32 %v316, 2147483648
          %v329 = vor.u32 1.1754944e-38, %v328
          %v330 = vsel %vm327, %v329, %v325
          %v331 = vmul.f32 %v314, %v330
          %332 = vst.msk [vmem:[%s235] sm:$0x1] %vm309, %v331
        $region44: #{tpu_custom_call.1} parent=27 // pred_fallthru
          _
        %p333 = scmp.lt.s32.totalorder %s25, 1
        %s334 = scalar_select %p333, %s25, 1
        %s335 = scalar_lea.vmem %s3, %s334
        // Predicated region
        $region45: #{tpu_custom_call.1} parent=27 // pred_check
          %p336 = pneg %p115
        $region46: #{tpu_custom_call.1} parent=27 // pred_check_branch
          %338 = sbr.rel (%p336) target = $region48
        $region47: #{tpu_custom_call.1} parent=27 // pred_region
          _
        $region48: #{tpu_custom_call.1} parent=27 // pred_fallthru
          _
      $region28: #{tpu_custom_call.1} parent=5 // pred_fallthru
        _
      %p339 = scmp.le.s32.totalorder 2, %s16
      // Predicated region
      $region49: #{tpu_custom_call.1} parent=5 // pred_check
        %p340 = pneg %p339
      $region50: #{tpu_custom_call.1} parent=5 // pred_check_branch
        %342 = sbr.rel (%p340) target = $region52
      $region51: #{tpu_custom_call.1} parent=5 // pred_region
        %s343 = ssub.s32 %s16, 2
        // Predicated region
        $region53: #{tpu_custom_call.1} parent=51 // pred_check
          %p344 = pneg %p121
        $region54: #{tpu_custom_call.1} parent=51 // pred_check_branch
          %346 = sbr.rel (%p344) target = $region56
        $region55: #{tpu_custom_call.1} parent=51 // pred_region
          %p347 = scmp.lt.s32.totalorder %s27, 1
          %s348 = scalar_select %p347, %s27, 1
          %s349 = scalar_lea.vmem %s3, %s348
        $region56: #{tpu_custom_call.1} parent=51 // pred_fallthru
          _
      $region52: #{tpu_custom_call.1} parent=5 // pred_fallthru
        _
    $region6: #{tpu_custom_call.1} parent=1 // loop_footer
      %s20 = sadd.s32 1, %s16
    $region7: #{tpu_custom_call.1} parent=1 // loop_footer_branch
      %15 = sbr.rel target = $region3
    $region8: #{tpu_custom_call.1} parent=1 // loop_exit
      _
    %350 = vsyncpa [#allocation6], 1
    %s351 = scalar_lea.sflag [#allocation6], 1
    %352 = vsyncpa %s351, 1
    %353 = vsyncpa [#allocation8], 1
    %s354 = scalar_lea.sflag [#allocation8], 1
    %355 = vsyncpa %s354, 1

</llo_original>
